<compile_context>
chip_gen: v7x
topology: tpu7x:2x2x1
jax: 0.10.0
libtpu: 0.0.40
codegen_flags: <defaults>
</compile_context>

<pallas_src>
import jax
import jax.numpy as jnp
from jax.experimental import pallas as pl
from jax.experimental.pallas import tpu as pltpu


def _round_up(n, m):
    return ((n + m - 1) // m) * m


def rejnet_kernel(p_ref, x_ref, o_ref):
    # p_ref: SMEM (9,) f32 = [w1_00, w1_01, w1_10, w1_11, b1_0, b1_1, w2_0, w2_1, b2]
    # x_ref: VMEM (2, TILE_B)   -- feature on sublanes, batch on lanes
    # o_ref: VMEM (1, TILE_B)
    xv = x_ref[...]            # single full-tile load
    x0 = xv[0:1, :]            # (1, TILE_B) -- static sublane slices, no layout cost
    x1 = xv[1:2, :]

    w1_00 = p_ref[0]; w1_01 = p_ref[1]
    w1_10 = p_ref[2]; w1_11 = p_ref[3]
    b1_0  = p_ref[4]; b1_1  = p_ref[5]
    w2_0  = p_ref[6]; w2_1  = p_ref[7]
    b2    = p_ref[8]

    # hidden1: h_j = tanh(x0*w1[0,j] + x1*w1[1,j] + b1[j])   (VPU FMAs + EUP tanh)
    h0 = jnp.tanh(x0 * w1_00 + x1 * w1_10 + b1_0)
    h1 = jnp.tanh(x0 * w1_01 + x1 * w1_11 + b1_1)
    # out: y = h0*w2[0] + h1*w2[1] + b2   -> single unmasked lane-dense store
    o_ref[...] = h0 * w2_0 + h1 * w2_1 + b2


def rejnet_forward(x, w1, b1, w2, b2, *, tile_b=65536):
    """x: (B, 2) f32.  w1: (2, 2) stored as (in, out), b1: (2,), w2: (2, 1), b2: (1,)."""
    B, d = x.shape
    assert d == 2, "RejNet.forward only shape-checks for d == 2"

    # Lane-dense: batch on the last (lane) axis, padded to a multiple of the tile.
    tile_b = min(tile_b, _round_up(B, 128))
    b_pad = _round_up(B, tile_b)
    x_t = jnp.transpose(x).astype(jnp.float32)          # (2, B) -- layout plumbing only
    if b_pad != B:
        x_t = jnp.pad(x_t, ((0, 0), (0, b_pad - B)))    # (2, B_pad)

    params = jnp.concatenate([
        jnp.reshape(w1, (-1,)), jnp.reshape(b1, (-1,)),
        jnp.reshape(w2, (-1,)), jnp.reshape(b2, (-1,)),
    ]).astype(jnp.float32)                               # (9,)

    grid = (b_pad // tile_b,)
    out = pl.pallas_call(
        rejnet_kernel,
        out_shape=jax.ShapeDtypeStruct((1, b_pad), jnp.float32),
        grid=grid,
        in_specs=[
            pl.BlockSpec(memory_space=pltpu.MemorySpace.SMEM),   # params, resident in SMEM
            pl.BlockSpec((2, tile_b), lambda i: (0, i)),         # x tile (lane-dense batch)
        ],
        out_specs=pl.BlockSpec((1, tile_b), lambda i: (0, i)),   # lane-dense output tile
        compiler_params=pltpu.CompilerParams(
            dimension_semantics=("parallel",),        # shard batch tiles across TCs on v7x
            vmem_limit_bytes=32 * 1024 * 1024,        # explicit budget; tiles are << this
        ),
    )(params, x_t)

    return jnp.reshape(out[0, :B], (B, 1))


def init_params(key, d):
    """Deterministic init mimicking PyTorch nn.Linear default (U[-1/sqrt(fan_in), 1/sqrt(fan_in)])."""
    k1, k2, k3, k4 = jax.random.split(key, 4)
    bound = 1.0 / jnp.sqrt(jnp.float32(d))
    # hidden1: Linear(d, 2) stored as (in, out) so y = x @ w1 + b1
    w1 = jax.random.uniform(k1, (d, 2), jnp.float32, -bound, bound)
    b1 = jax.random.uniform(k2, (2,), jnp.float32, -bound, bound)
    # out: Linear(d, 1) -- only valid when d == 2 (see note above)
    w2 = jax.random.uniform(k3, (d, 1), jnp.float32, -bound, bound)
    b2 = jax.random.uniform(k4, (1,), jnp.float32, -bound, bound)
    return w1, b1, w2, b2


def rejnet_reference(x, w1, b1, w2, b2):
    h = jnp.tanh(x @ w1 + b1)
    return h @ w2 + b2


if __name__ == "__main__":
    d = 2
    key = jax.random.PRNGKey(0)
    kx, kp, kx2 = jax.random.split(key, 3)
    w1, b1, w2, b2 = init_params(kp, d)

    # Small batch (single tile).
    B = 8
    x = jax.random.normal(kx, (B, d), jnp.float32)
    out = jax.block_until_ready(rejnet_forward(x, w1, b1, w2, b2))
    ref = rejnet_reference(x, w1, b1, w2, b2)
    assert out.shape == (B, 1), out.shape
    assert jnp.allclose(out, ref, atol=1e-5, rtol=1e-5)

    # Larger, non-multiple batch exercising the tiled grid + padding path.
    B2 = 1000
    x2 = jax.random.normal(kx2, (B2, d), jnp.float32)
    out2 = jax.block_until_ready(rejnet_forward(x2, w1, b1, w2, b2, tile_b=128))
    ref2 = rejnet_reference(x2, w1, b1, w2, b2)
    assert out2.shape == (B2, 1), out2.shape
    assert jnp.allclose(out2, ref2, atol=1e-5, rtol=1e-5)

    print("KERNEL_OK")
</pallas_src>

<mosaic_0001>
module attributes {stable_mosaic.version = 11 : i64} {
  func.func @rejnet_kernel(%arg0: i32, %arg1: memref<9xf32, #tpu.memory_space<smem>>, %arg2: memref<2x128xf32, #tpu.memory_space<vmem>>, %arg3: memref<1x128xf32, #tpu.memory_space<vmem>>) attributes {dimension_semantics = [#tpu.dimension_semantics<parallel>], iteration_bounds = array<i64: 1>, scalar_prefetch = 0 : i64, scratch_operands = 0 : i64, tpu.core_type = #tpu.core_type<tc>, window_params = [{transform_indices = @transform_0, window_bounds = array<i64: 9>}, {transform_indices = @transform_1, window_bounds = array<i64: 2, 128>}, {transform_indices = @transform_2, window_bounds = array<i64: 1, 128>}]} {
    %c0 = arith.constant 0 : index
    %c0_0 = arith.constant 0 : index
    %0 = vector.load %arg2[%c0, %c0_0] : memref<2x128xf32, #tpu.memory_space<vmem>>, vector<2x128xf32>
    %1 = vector.extract_strided_slice %0 {offsets = [0, 0], sizes = [1, 128], strides = [1, 1]} : vector<2x128xf32> to vector<1x128xf32>
    %2 = vector.extract_strided_slice %0 {offsets = [1, 0], sizes = [1, 128], strides = [1, 1]} : vector<2x128xf32> to vector<1x128xf32>
    %c0_1 = arith.constant 0 : index
    %3 = memref.load %arg1[%c0_1] : memref<9xf32, #tpu.memory_space<smem>>
    %c1 = arith.constant 1 : index
    %4 = memref.load %arg1[%c1] : memref<9xf32, #tpu.memory_space<smem>>
    %c2 = arith.constant 2 : index
    %5 = memref.load %arg1[%c2] : memref<9xf32, #tpu.memory_space<smem>>
    %c3 = arith.constant 3 : index
    %6 = memref.load %arg1[%c3] : memref<9xf32, #tpu.memory_space<smem>>
    %c4 = arith.constant 4 : index
    %7 = memref.load %arg1[%c4] : memref<9xf32, #tpu.memory_space<smem>>
    %c5 = arith.constant 5 : index
    %8 = memref.load %arg1[%c5] : memref<9xf32, #tpu.memory_space<smem>>
    %c6 = arith.constant 6 : index
    %9 = memref.load %arg1[%c6] : memref<9xf32, #tpu.memory_space<smem>>
    %c7 = arith.constant 7 : index
    %10 = memref.load %arg1[%c7] : memref<9xf32, #tpu.memory_space<smem>>
    %c8 = arith.constant 8 : index
    %11 = memref.load %arg1[%c8] : memref<9xf32, #tpu.memory_space<smem>>
    %12 = vector.broadcast %3 : f32 to vector<1x128xf32>
    %13 = arith.mulf %1, %12 : vector<1x128xf32>
    %14 = vector.broadcast %5 : f32 to vector<1x128xf32>
    %15 = arith.mulf %2, %14 : vector<1x128xf32>
    %16 = arith.addf %13, %15 : vector<1x128xf32>
    %17 = vector.broadcast %7 : f32 to vector<1x128xf32>
    %18 = arith.addf %16, %17 : vector<1x128xf32>
    %19 = math.tanh %18 : vector<1x128xf32>
    %20 = vector.broadcast %4 : f32 to vector<1x128xf32>
    %21 = arith.mulf %1, %20 : vector<1x128xf32>
    %22 = vector.broadcast %6 : f32 to vector<1x128xf32>
    %23 = arith.mulf %2, %22 : vector<1x128xf32>
    %24 = arith.addf %21, %23 : vector<1x128xf32>
    %25 = vector.broadcast %8 : f32 to vector<1x128xf32>
    %26 = arith.addf %24, %25 : vector<1x128xf32>
    %27 = math.tanh %26 : vector<1x128xf32>
    %28 = vector.broadcast %9 : f32 to vector<1x128xf32>
    %29 = arith.mulf %19, %28 : vector<1x128xf32>
    %30 = vector.broadcast %10 : f32 to vector<1x128xf32>
    %31 = arith.mulf %27, %30 : vector<1x128xf32>
    %32 = arith.addf %29, %31 : vector<1x128xf32>
    %33 = vector.broadcast %11 : f32 to vector<1x128xf32>
    %34 = arith.addf %32, %33 : vector<1x128xf32>
    %c0_2 = arith.constant 0 : index
    %c0_3 = arith.constant 0 : index
    %35 = vector.load %arg3[%c0_2, %c0_3] : memref<1x128xf32, #tpu.memory_space<vmem>>, vector<1x128xf32>
    tpu.vector_store %arg3[%c0_2, %c0_3], %34 {strides = array<i32>} : memref<1x128xf32, #tpu.memory_space<vmem>>, vector<1x128xf32>,
    return
  }
  func.func @transform_0(%arg0: i32) -> i32 {
    %c0_i32 = arith.constant 0 : i32
    %c0_i32_0 = arith.constant 0 : i32
    return %c0_i32 : i32
  }
  func.func @transform_1(%arg0: i32) -> (i32, i32) {
    %c0_i32 = arith.constant 0 : i32
    %c0_i32_0 = arith.constant 0 : i32
    return %c0_i32, %arg0 : i32, i32
  }
  func.func @transform_2(%arg0: i32) -> (i32, i32) {
    %c0_i32 = arith.constant 0 : i32
    %c0_i32_0 = arith.constant 0 : i32
    return %c0_i32, %arg0 : i32, i32
  }
}

</mosaic_0001>

<llo_original>
// kernel: tpu_custom_call.1
$region0: #{tpu_custom_call.1}
  #allocation0 [shape = 'u32[]', space=smem, size = 0x4, offset = 0x4, fixed_abs, tag = 'smem constant byte address 0x4 - core index']
  #allocation1 [shape = 'u32[144,128]{1,0:T(1,128)}', space=vmem, size = 0x12000, scoped, tag = 'internal scratch']
  %s0 = inlined_call_operand.hbm [shape: f32[9], index: 0, kind: input, shape index: {}]
  %s1 = inlined_call_operand.vmem [shape: f32[2,128], index: 1, kind: input, shape index: {}]
  %s2 = inlined_call_operand.hbm [shape: f32[1,128], index: 2, kind: output, shape index: {}]
  %s3 = sld [smem:[#allocation0]]
  $region22: #{tpu_custom_call.1} parent=0
    _
  %s5 = ssub.s32 1, %s3
  %s6 = scalar_select 0, %s5, %s3
  $region1: #{tpu_custom_call.1} parent=0
    #allocation2 [shape = 'u8[512]{0}', space=smem, size = 0x200, scoped, tag = 'input window, operand 0, single buffered']
    #allocation3 [shape = 's32[1]{0}', space=sflag, size = 0x4, scoped, tag = 'scoped memory for tpu_custom_call.1']
    #allocation4 [shape = 's32[1]{0}', space=sflag, size = 0x4, scoped, tag = 'scoped memory for tpu_custom_call.1']
    #allocation5 [shape = 'u8[512]{0}', space=vmem, size = 0x400, scoped, tag = 'output window, operand 0, single buffered']
    %7 = vsyncpa [#allocation4], 0
    %8 = vsyncpa [#allocation3], 0
    // Predicated region
    $region2: #{tpu_custom_call.1} parent=1 // pred_check
      _
    $region3: #{tpu_custom_call.1} parent=1 // pred_check_branch
      %10 = sbr.rel (0) target = $region5
    $region4: #{tpu_custom_call.1} parent=1 // pred_region
      %s12 = ssub.s32 16, 16
      %13 = vsyncadd [#allocation4], %s12
      %16 = dma.hbm_to_smem %s0, 16, [#allocation2], [#allocation4]
    $region5: #{tpu_custom_call.1} parent=1 // pred_fallthru
      _
    // Predicated region
    $region6: #{tpu_custom_call.1} parent=1 // pred_check
      _
    $region7: #{tpu_custom_call.1} parent=1 // pred_check_branch
      %18 = sbr.rel (0) target = $region9
    $region8: #{tpu_custom_call.1} parent=1 // pred_region
      _
    $region9: #{tpu_custom_call.1} parent=1 // pred_fallthru
      _
    // Predicated region
    $region10: #{tpu_custom_call.1} parent=1 // pred_check
      _
    $region11: #{tpu_custom_call.1} parent=1 // pred_check_branch
      %20 = sbr.rel (0) target = $region13
    $region12: #{tpu_custom_call.1} parent=1 // pred_region
      %21 = dma.done [#allocation4], 16
    $region13: #{tpu_custom_call.1} parent=1 // pred_fallthru
      _
    %22 = sfence
    %v23 = vld [vmem:[%s1] sm:$0x3]
    %s24 = sld [smem:[#allocation2]]
    %s25 = sld [smem:[#allocation2 + $0x1]]
    %s26 = sld [smem:[#allocation2 + $0x2]]
    %s27 = sld [smem:[#allocation2 + $0x3]]
    %s28 = sld [smem:[#allocation2 + $0x4]]
    %s29 = sld [smem:[#allocation2 + $0x5]]
    %s30 = sld [smem:[#allocation2 + $0x6]]
    %s31 = sld [smem:[#allocation2 + $0x7]]
    %s32 = sld [smem:[#allocation2 + $0x8]]
    %v33 = vstv %s24
    %v34 = vmul.f32 %v23, %v33
    %v35 = vstv %s26
    %v36 = vmul.f32 %v23, %v35
    %v38 = vrot.slane %v36, 1
    %v40 = vadd.f32 %v34, %v38
    %v41 = vstv %s28
    %v42 = vadd.f32 %v40, %v41
    %v43 = vtanh.pop %v42
    %v44 = vstv %s25
    %v45 = vmul.f32 %v23, %v44
    %v46 = vstv %s27
    %v47 = vmul.f32 %v23, %v46
    %v49 = vrot.slane %v47, 1
    %v51 = vadd.f32 %v45, %v49
    %v52 = vstv %s29
    %v53 = vadd.f32 %v51, %v52
    %v54 = vtanh.pop %v53
    %v55 = vstv %s30
    %v56 = vmul.f32 %v43, %v55
    %v57 = vstv %s31
    %v58 = vmul.f32 %v54, %v57
    %v59 = vadd.f32 %v56, %v58
    %v60 = vstv %s32
    %v61 = vadd.f32 %v59, %v60
    %62 = vst [vmem:[#allocation5] sm:$0x1] %v61
    // Predicated region
    $region14: #{tpu_custom_call.1} parent=1 // pred_check
      _
    $region15: #{tpu_custom_call.1} parent=1 // pred_check_branch
      %64 = sbr.rel (0) target = $region17
    $region16: #{tpu_custom_call.1} parent=1 // pred_region
      %s66 = ssub.s32 16, 16
      %67 = vsyncadd [#allocation3], %s66
      %s69 = sshll.u32 [#allocation5], 4
      %s70 = int_to_ptr.vmem [resolvable:$true] %s69
      %72 = dma.vmem_to_hbm [thread:$0]  %s70, 16, %s2, [#allocation3]
    $region17: #{tpu_custom_call.1} parent=1 // pred_fallthru
      _
    // Predicated region
    $region18: #{tpu_custom_call.1} parent=1 // pred_check
      _
    $region19: #{tpu_custom_call.1} parent=1 // pred_check_branch
      %74 = sbr.rel (0) target = $region21
    $region20: #{tpu_custom_call.1} parent=1 // pred_region
      %75 = dma.done [#allocation3], 16
    $region21: #{tpu_custom_call.1} parent=1 // pred_fallthru
      _
    %76 = vsyncpa [#allocation3], 1
    %77 = vsyncpa [#allocation4], 1

</llo_original>
